<compile_context>
chip_gen: v7x
topology: tpu7x:2x2x1
jax: 0.10.0
libtpu: 0.0.40
codegen_flags: <defaults>
</compile_context>

<pallas_src>
import functools

import jax
import jax.numpy as jnp
from jax.experimental import pallas as pl
from jax.experimental.pallas import tpu as pltpu


# ---------------------------------------------------------------------------
# Per-generation budgets
# ---------------------------------------------------------------------------
def _tpu_budgets():
    cap = None
    try:
        info = pltpu.get_tpu_info()
        cap = getattr(info, "vmem_capacity_bytes", None)
    except Exception:
        cap = None
    if cap is not None and cap >= (100 << 20):
        # v5e / v6e: 128 MiB physical VMEM -> large tiles, fewer grid steps.
        return {"vmem_limit": 100 << 20, "corr_budget": 28 << 20}
    # v7x (64 MiB per TensorCore) or unknown: stay conservative.
    return {"vmem_limit": 40 << 20, "corr_budget": 12 << 20}


def _round_up(x, m):
    return ((x + m - 1) // m) * m


def _pool_tiles(C, Q, S, corr_budget, max_q_tile, max_s_tile):
    """Pick (q_tile, Q_pad, s_tile, S_pad) for the pooling kernel.

    q_tile: multiple of 16 (bf16 sublane packing) so the in-kernel leading-dim
      merge (C, q_tile, s) -> (C*q_tile, s) is a free retiling; capped to bound
      the resident accumulator block and to give v7x a parallel Q axis.
    s_tile: multiple of 128 (lanes), preferring multiples of 256 (full MXU K
      depth on v6e/v7x), grown while the double-buffered bf16 corr tile fits
      the per-generation budget.  S is zero-padded to a multiple of s_tile.
    """
    q_cap = max(16, (max_q_tile // 16) * 16)
    q_tile = min(_round_up(Q, 16), q_cap)
    Q_pad = _round_up(Q, q_tile)

    s_cap = max(128, (max_s_tile // 128) * 128)
    s_full = min(_round_up(S, 128), s_cap)

    def fits(t):  # double-buffered bf16 corr tile
        return C * q_tile * t * 2 * 2 <= corr_budget

    s_tile = 128
    for cand in (256, 512, 1024, 2048, 4096, 8192, 16384):
        if cand <= s_full and fits(cand):
            s_tile = cand
    if fits(s_full):
        s_tile = max(s_tile, s_full)
    S_pad = _round_up(S, s_tile)
    return q_tile, Q_pad, s_tile, S_pad


def _act_q_tile(Q, max_q_tile):
    """Q tile for the activation (feat / decode) kernels: a multiple of 128
    dividing Q when possible, else the full (untiled) Q."""
    if Q >= 256 and Q % 128 == 0 and max_q_tile >= 128:
        t = min((max_q_tile // 128) * 128, Q)
        while Q % t != 0:
            t -= 128
        return t
    # TODO(synk): pad Q for large non-128-multiple query resolutions.
    return Q


# ---------------------------------------------------------------------------
# Kernel 1: masked sum-pooling over the support-spatial axis S (MXU matvec).
#   raw[b, c, q] = sum_s corr[b, c, q, s] * counts[b, s]
# counts are exact integers (bf16-representable); the divide by the global mask
# sum happens in f32 in the wrapper, so accumulation over S tiles is exact.
# The output block is resident across the S grid axis and is the f32 accumulator.
# ---------------------------------------------------------------------------
def _masked_pool_kernel(corr_ref, cnt_ref, out_ref):
    @pl.when(pl.program_id(2) == 0)
    def _init():
        out_ref[...] = jnp.zeros_like(out_ref)

    _, C, q_tile, s_tile = corr_ref.shape
    corr2d = corr_ref[0].reshape(C * q_tile, s_tile)           # bf16, free merge
    w = cnt_ref[0]                                             # (s_tile, 1) bf16
    part = jnp.dot(corr2d, w, preferred_element_type=jnp.float32)   # (C*q_tile, 1)
    out_ref[0] += part.reshape(C, q_tile, 1)                   # free split


def masked_pool(corr_bf, cnt_bf, q_tile, s_tile, vmem_limit):
    """corr_bf: [B,C,Q_pad,S_pad] bf16, cnt_bf: [B,S_pad,1] bf16 ->
    raw pooled sums [B,C,Q_pad,1] f32."""
    B, C, Q_pad, S_pad = corr_bf.shape
    grid = (B, Q_pad // q_tile, S_pad // s_tile)
    return pl.pallas_call(
        _masked_pool_kernel,
        out_shape=jax.ShapeDtypeStruct((B, C, Q_pad, 1), jnp.float32),
        grid=grid,
        in_specs=[
            pl.BlockSpec((1, C, q_tile, s_tile), lambda b, q, s: (b, 0, q, s)),
            pl.BlockSpec((1, s_tile, 1), lambda b, q, s: (b, s, 0)),
        ],
        out_specs=pl.BlockSpec((1, C, q_tile, 1), lambda b, q, s: (b, 0, q, 0)),
        compiler_params=pltpu.CompilerParams(
            dimension_semantics=("parallel", "parallel", "arbitrary"),
            vmem_limit_bytes=vmem_limit),
    )(corr_bf, cnt_bf)


# ---------------------------------------------------------------------------
# Kernel 2: per-level channel mix (+ optional feature affinity) at NATIVE Q_l.
#   feat_l = relu(Wc_l pooled_l [+ Wf_l qfeat_l] + b_l)     -> (D, Q_l) bf16
# ---------------------------------------------------------------------------
def _feat_level_kernel(*refs, affinity):
    if affinity:
        pooled_ref, qf_ref, wc_ref, wf_ref, b_ref, out_ref = refs
    else:
        pooled_ref, wc_ref, b_ref, out_ref = refs
    x = jnp.dot(wc_ref[...], pooled_ref[0], preferred_element_type=jnp.float32)
    if affinity:
        x = x + jnp.dot(wf_ref[...], qf_ref[0], preferred_element_type=jnp.float32)
    x = jnp.maximum(x + b_ref[...], 0.0)
    out_ref[0] = x.astype(out_ref.dtype)


def feat_level(pooled_bf, qf_bf, w_corr_t, w_feat_t, bias, q_tile, vmem_limit):
    B, C, Q = pooled_bf.shape
    D = w_corr_t.shape[0]
    affinity = qf_bf is not None
    grid = (B, Q // q_tile)

    def act_spec(ch):
        return pl.BlockSpec((1, ch, q_tile), lambda b, q: (b, 0, q))

    def w_spec(a):
        return pl.BlockSpec(a.shape, lambda b, q: (0, 0))

    inputs = [pooled_bf]
    in_specs = [act_spec(C)]
    if affinity:
        inputs.append(qf_bf)
        in_specs.append(act_spec(qf_bf.shape[1]))
    inputs.append(w_corr_t)
    in_specs.append(w_spec(w_corr_t))
    if affinity:
        inputs.append(w_feat_t)
        in_specs.append(w_spec(w_feat_t))
    inputs.append(bias)
    in_specs.append(w_spec(bias))

    kernel = functools.partial(_feat_level_kernel, affinity=affinity)
    return pl.pallas_call(
        kernel,
        out_shape=jax.ShapeDtypeStruct((B, D, Q), jnp.bfloat16),
        grid=grid,
        in_specs=in_specs,
        out_specs=pl.BlockSpec((1, D, q_tile), lambda b, q: (b, 0, q)),
        compiler_params=pltpu.CompilerParams(
            dimension_semantics=("parallel", "parallel"),
            vmem_limit_bytes=vmem_limit),
    )(*inputs)


# ---------------------------------------------------------------------------
# Kernel 3: finest-level mix + fusion + decoder (Q-tiled, lane-dense output).
#   feat   = relu(Wc pooled_fin [+ Wf qfin] + b)
#   fused  = partial (sum of upsampled coarse feats) + feat
#   proj   = relu(Wp qfin)
#   logits = Wd1 fused + Wd2 proj + b_dec                    -> (2, Q) f32
# ---------------------------------------------------------------------------
def _decode_kernel(*refs, affinity_last):
    if affinity_last:
        (partial_ref, pooled_ref, qf_ref, wc_ref, wf_ref, b_ref,
         wp_ref, wd1_ref, wd2_ref, bd_ref, out_ref) = refs
    else:
        (partial_ref, pooled_ref, qf_ref, wc_ref, b_ref,
         wp_ref, wd1_ref, wd2_ref, bd_ref, out_ref) = refs

    qf = qf_ref[0]
    feat = jnp.dot(wc_ref[...], pooled_ref[0], preferred_element_type=jnp.float32)
    if affinity_last:
        feat = feat + jnp.dot(wf_ref[...], qf, preferred_element_type=jnp.float32)
    feat = jnp.maximum(feat + b_ref[...], 0.0)
    fused = partial_ref[0].astype(jnp.float32) + feat
    proj = jnp.maximum(jnp.dot(wp_ref[...], qf,
                               preferred_element_type=jnp.float32), 0.0)
    logits = (jnp.dot(wd1_ref[...], fused, preferred_element_type=jnp.float32)
              + jnp.dot(wd2_ref[...], proj, preferred_element_type=jnp.float32)
              + bd_ref[...])
    out_ref[0] = logits


def decode(partial_bf, pooled_fin_bf, qfin_bf, w_corr_t, w_feat_t, bias,
           w_proj_t, w_dec1_t, w_dec2_t, b_dec, q_tile, vmem_limit):
    B, D, Qf = partial_bf.shape
    C = pooled_fin_bf.shape[1]
    Cq = qfin_bf.shape[1]
    affinity_last = w_feat_t is not None
    grid = (B, Qf // q_tile)

    def act_spec(ch):
        return pl.BlockSpec((1, ch, q_tile), lambda b, q: (b, 0, q))

    def w_spec(a):
        return pl.BlockSpec(a.shape, lambda b, q: (0, 0))

    inputs = [partial_bf, pooled_fin_bf, qfin_bf, w_corr_t]
    in_specs = [act_spec(D), act_spec(C), act_spec(Cq), w_spec(w_corr_t)]
    if affinity_last:
        inputs.append(w_feat_t)
        in_specs.append(w_spec(w_feat_t))
    inputs += [bias, w_proj_t, w_dec1_t, w_dec2_t, b_dec]
    in_specs += [w_spec(bias), w_spec(w_proj_t), w_spec(w_dec1_t),
                 w_spec(w_dec2_t), w_spec(b_dec)]

    kernel = functools.partial(_decode_kernel, affinity_last=affinity_last)
    return pl.pallas_call(
        kernel,
        out_shape=jax.ShapeDtypeStruct((B, 2, Qf), jnp.float32),
        grid=grid,
        in_specs=in_specs,
        out_specs=pl.BlockSpec((1, 2, q_tile), lambda b, q: (b, 0, q)),
        compiler_params=pltpu.CompilerParams(
            dimension_semantics=("parallel", "parallel"),
            vmem_limit_bytes=vmem_limit),
    )(*inputs)


# ---------------------------------------------------------------------------
# Plain-JAX glue (layout plumbing only)
# ---------------------------------------------------------------------------
def _mask_counts(mask, hs, ws):
    """mask: [B, H, W] (0/1) -> per-support-cell foreground counts [B, hs*ws].
    Counts are integers <= (H/hs)*(W/ws), exactly representable in bf16."""
    B, H, W = mask.shape
    r, c = H // hs, W // ws
    cnt = mask.reshape(B, hs, r, ws, c).sum(axis=(2, 4))
    return cnt.reshape(B, hs * ws)


def _upsample_nearest(x, h_src, w_src, h_dst, w_dst):
    """x: [B, C, h_src*w_src] -> nearest-upsampled [B, C, h_dst*w_dst]."""
    if h_src == h_dst and w_src == w_dst:
        return x
    B, C, _ = x.shape
    rh, rw = h_dst // h_src, w_dst // w_src
    f = x.reshape(B, C, h_src, w_src)
    f = jnp.repeat(jnp.repeat(f, rh, axis=2), rw, axis=3)
    return f.reshape(B, C, h_dst * w_dst)


class VATLearnerPallas:
    """Pallas re-implementation of VATLearner.forward."""

    def __init__(self, benchmark, inch, cq, hidden, key,
                 max_q_tile=512, max_s_tile=4096, max_act_q_tile=1024):
        if benchmark == 'pascal':
            feature_affinity = (False, True, True)
        elif benchmark == 'coco':
            feature_affinity = (False, False, True)
        elif benchmark == 'fss':
            feature_affinity = (True, True, True)
        else:
            raise ValueError(f"unknown benchmark: {benchmark}")
        self.feature_affinity = feature_affinity
        self.inch = tuple(inch)
        self.cq = cq
        self.hidden = hidden
        self.max_q_tile = max_q_tile
        self.max_s_tile = max_s_tile
        self.max_act_q_tile = max_act_q_tile

        budgets = _tpu_budgets()
        self.vmem_limit = budgets["vmem_limit"]
        self.corr_budget = budgets["corr_budget"]

        n = len(inch)
        ks = jax.random.split(key, 3 * n + 4)
        bf16 = jnp.bfloat16
        # Weights stored transposed (output-dim first) so all in-kernel matmuls
        # are plain (M, K) @ (K, Q) contractions with Q on the lane axis.
        self.w_corr_t = [(0.1 * jax.random.normal(ks[i], (hidden, c), jnp.float32)
                          ).astype(bf16) for i, c in enumerate(inch)]
        self.w_feat_t = [(0.1 * jax.random.normal(ks[n + i], (hidden, cq), jnp.float32)
                          ).astype(bf16) for i in range(n)]
        self.bias = [0.05 * jax.random.normal(ks[2 * n + i], (hidden, 1), jnp.float32)
                     for i in range(n)]
        self.w_proj_t = (0.1 * jax.random.normal(ks[3 * n], (hidden, cq), jnp.float32)
                         ).astype(bf16)
        self.w_dec1_t = 0.1 * jax.random.normal(ks[3 * n + 1], (2, hidden), jnp.float32)
        self.w_dec2_t = 0.1 * jax.random.normal(ks[3 * n + 2], (2, hidden), jnp.float32)
        self.b_dec = 0.05 * jax.random.normal(ks[3 * n + 3], (2, 1), jnp.float32)

    def __call__(self, hypercorr_pyramid, query_feats, support_mask):
        B = hypercorr_pyramid[0].shape[0]
        L = len(hypercorr_pyramid)
        h_fin, w_fin = hypercorr_pyramid[-1].shape[2], hypercorr_pyramid[-1].shape[3]
        Qf = h_fin * w_fin
        bf16 = jnp.bfloat16

        partial = None
        pooled_fin_bf = None
        for l, corr in enumerate(hypercorr_pyramid):
            _, c, hq, wq, hs, ws = corr.shape
            Q, S = hq * wq, hs * ws
            q_tile, Q_pad, s_tile, S_pad = _pool_tiles(
                c, Q, S, self.corr_budget, self.max_q_tile, self.max_s_tile)

            corr_bf = corr.reshape(B, c, Q, S).astype(bf16)          # bf16 HBM stream
            if Q_pad != Q or S_pad != S:
                corr_bf = jnp.pad(corr_bf,
                                  ((0, 0), (0, 0), (0, Q_pad - Q), (0, S_pad - S)))

            cnt = _mask_counts(support_mask, hs, ws)                  # exact integers
            inv = 1.0 / (jnp.sum(cnt, axis=1) + 1e-6)                 # (B,) f32
            cnt_bf = jnp.pad(cnt, ((0, 0), (0, S_pad - S))).astype(bf16)
            cnt_bf = cnt_bf.reshape(B, S_pad, 1)

            raw = masked_pool(corr_bf, cnt_bf, q_tile, s_tile, self.vmem_limit)
            pooled = raw[:, :, :Q, 0] * inv[:, None, None]            # (B, c, Q) f32
            pooled_bf = pooled.astype(bf16)

            if l < L - 1:
                qf_bf = None
                if self.feature_affinity[l]:
                    qf_bf = query_feats[l].reshape(B, self.cq, Q).astype(bf16)
                qt = _act_q_tile(Q, self.max_act_q_tile)
                feat = feat_level(pooled_bf, qf_bf, self.w_corr_t[l],
                                  self.w_feat_t[l] if self.feature_affinity[l] else None,
                                  self.bias[l], qt, self.vmem_limit)  # (B, D, Q) bf16
                feat_up = _upsample_nearest(feat, hq, wq, h_fin, w_fin
                                            ).astype(jnp.float32)
                partial = feat_up if partial is None else partial + feat_up
            else:
                pooled_fin_bf = pooled_bf

        if partial is None:
            partial = jnp.zeros((B, self.hidden, Qf), jnp.float32)
        partial_bf = partial.astype(bf16)
        qfin_bf = query_feats[-1].reshape(B, self.cq, Qf).astype(bf16)

        qt = _act_q_tile(Qf, self.max_act_q_tile)
        logits = decode(partial_bf, pooled_fin_bf, qfin_bf,
                        self.w_corr_t[-1],
                        self.w_feat_t[-1] if self.feature_affinity[-1] else None,
                        self.bias[-1], self.w_proj_t, self.w_dec1_t, self.w_dec2_t,
                        self.b_dec, qt, self.vmem_limit)              # (B, 2, Qf)
        return logits.reshape(B, 2, h_fin, w_fin)                     # NCHW


def reference_forward(model, hypercorr_pyramid, query_feats, support_mask):
    """Pure-JAX reference mirroring the kernel pipeline's bf16 rounding points."""
    B = hypercorr_pyramid[0].shape[0]
    L = len(hypercorr_pyramid)
    h_fin, w_fin = hypercorr_pyramid[-1].shape[2], hypercorr_pyramid[-1].shape[3]
    Qf = h_fin * w_fin
    f32, bf16 = jnp.float32, jnp.bfloat16

    partial = None
    feat_fin = None
    for l, corr in enumerate(hypercorr_pyramid):
        _, c, hq, wq, hs, ws = corr.shape
        Q, S = hq * wq, hs * ws
        corr_f = corr.reshape(B, c, Q, S).astype(bf16).astype(f32)
        cnt = _mask_counts(support_mask, hs, ws)
        inv = 1.0 / (jnp.sum(cnt, axis=1) + 1e-6)
        pooled = jnp.einsum('bcqs,bs->bcq', corr_f, cnt) * inv[:, None, None]
        pooled = pooled.astype(bf16).astype(f32)

        feat = jnp.einsum('dc,bcq->bdq', model.w_corr_t[l].astype(f32), pooled)
        if model.feature_affinity[l]:
            qf = query_feats[l].reshape(B, model.cq, Q).astype(bf16).astype(f32)
            feat = feat + jnp.einsum('dc,bcq->bdq',
                                     model.w_feat_t[l].astype(f32), qf)
        feat = jnp.maximum(feat + model.bias[l][None], 0.0)
        if l < L - 1:
            feat = feat.astype(bf16).astype(f32)
            feat = _upsample_nearest(feat, hq, wq, h_fin, w_fin)
            partial = feat if partial is None else partial + feat
        else:
            feat_fin = feat

    if partial is None:
        partial = jnp.zeros((B, model.hidden, Qf), f32)
    partial = partial.astype(bf16).astype(f32)
    fused = partial + feat_fin
    qfin = query_feats[-1].reshape(B, model.cq, Qf).astype(bf16).astype(f32)
    proj = jnp.maximum(jnp.einsum('dc,bcq->bdq',
                                  model.w_proj_t.astype(f32), qfin), 0.0)
    logits = (jnp.einsum('kd,bdq->bkq', model.w_dec1_t, fused)
              + jnp.einsum('kd,bdq->bkq', model.w_dec2_t, proj)
              + model.b_dec[None])
    return logits.reshape(B, 2, h_fin, w_fin)


if __name__ == "__main__":
    key = jax.random.PRNGKey(0)
    B = 2
    inch = (3, 4, 6)          # hypercorrelation channels per pyramid level
    level_hw = (4, 8, 16)     # per-level (square) query/support spatial size
    Cq = 16                   # query feature channels
    D = 32                    # hidden dim of the aggregator
    H_img = 64                # support-mask resolution

    keys = jax.random.split(key, 8)
    hypercorr_pyramid = []
    query_feats = []
    for l, (c, h) in enumerate(zip(inch, level_hw)):
        corr = jax.nn.relu(
            jax.random.normal(keys[l], (B, c, h, h, h, h), jnp.float32))
        hypercorr_pyramid.append(corr)
        query_feats.append(
            jax.random.normal(keys[3 + l], (B, Cq, h, h), jnp.float32))
    support_mask = (jax.random.uniform(keys[6], (B, H_img, H_img)) > 0.5
                    ).astype(jnp.float32)

    # Small tile caps force multi-step S reduction (pl.when init/accumulate) and
    # Q-parallel grids even at these toy shapes.
    model = VATLearnerPallas(benchmark='pascal', inch=inch, cq=Cq, hidden=D,
                             key=keys[7], max_q_tile=128, max_s_tile=128,
                             max_act_q_tile=128)
    logits = jax.block_until_ready(model(hypercorr_pyramid, query_feats,
                                         support_mask))
    assert logits.shape == (B, 2, level_hw[-1], level_hw[-1]), logits.shape
    assert bool(jnp.all(jnp.isfinite(logits)))

    ref = reference_forward(model, hypercorr_pyramid, query_feats, support_mask)
    err = float(jnp.max(jnp.abs(logits - ref)))
    assert bool(jnp.allclose(logits, ref, rtol=5e-2, atol=5e-2)), err
    print("KERNEL_OK")
</pallas_src>

<mosaic_0001>
module attributes {stable_mosaic.version = 11 : i64} {
  func.func @_masked_pool_kernel(%arg0: i32, %arg1: i32, %arg2: i32, %arg3: memref<1x3x16x128xbf16, #tpu.memory_space<vmem>>, %arg4: memref<1x128x1xbf16, #tpu.memory_space<vmem>>, %arg5: memref<1x3x16x1xf32, #tpu.memory_space<vmem>>) attributes {dimension_semantics = [#tpu.dimension_semantics<parallel>, #tpu.dimension_semantics<parallel>, #tpu.dimension_semantics<arbitrary>], iteration_bounds = array<i64: 2, 1, 1>, scalar_prefetch = 0 : i64, scratch_operands = 0 : i64, tpu.core_type = #tpu.core_type<tc>, window_params = [{transform_indices = @transform_0, window_bounds = array<i64: 1, 3, 16, 128>}, {transform_indices = @transform_1, window_bounds = array<i64: 1, 128, 1>}, {transform_indices = @transform_2, window_bounds = array<i64: 1, 3, 16, 1>}]} {
    %c0_i32 = arith.constant 0 : i32
    %0 = arith.cmpi eq, %arg2, %c0_i32 : i32
    %1 = arith.extui %0 : i1 to i32
    %c0_i32_0 = arith.constant 0 : i32
    %2 = arith.cmpi ne, %1, %c0_i32_0 : i32
    scf.if %2 {
      %cst_15 = arith.constant 0.000000e+00 : f32
      %16 = vector.broadcast %cst_15 : f32 to vector<1x3x16x1xf32>
      %c0_16 = arith.constant 0 : index
      %c0_17 = arith.constant 0 : index
      %c0_18 = arith.constant 0 : index
      %c0_19 = arith.constant 0 : index
      %17 = vector.load %arg5[%c0_16, %c0_17, %c0_18, %c0_19] : memref<1x3x16x1xf32, #tpu.memory_space<vmem>>, vector<1x3x16x1xf32>
      tpu.vector_store %arg5[%c0_16, %c0_17, %c0_18, %c0_19], %16 {strides = array<i32>} : memref<1x3x16x1xf32, #tpu.memory_space<vmem>>, vector<1x3x16x1xf32>,
    } else {
    }
    %c0 = arith.constant 0 : index
    %c0_1 = arith.constant 0 : index
    %c0_2 = arith.constant 0 : index
    %c0_3 = arith.constant 0 : index
    %3 = vector.load %arg3[%c0, %c0_1, %c0_2, %c0_3] : memref<1x3x16x128xbf16, #tpu.memory_space<vmem>>, vector<1x3x16x128xbf16>
    %4 = vector.shape_cast %3 : vector<1x3x16x128xbf16> to vector<3x16x128xbf16>
    %5 = vector.shape_cast %4 : vector<3x16x128xbf16> to vector<48x128xbf16>
    %c0_4 = arith.constant 0 : index
    %c0_5 = arith.constant 0 : index
    %c0_6 = arith.constant 0 : index
    %6 = vector.load %arg4[%c0_4, %c0_5, %c0_6] : memref<1x128x1xbf16, #tpu.memory_space<vmem>>, vector<1x128x1xbf16>
    %7 = vector.shape_cast %6 : vector<1x128x1xbf16> to vector<128x1xbf16>
    %cst = arith.constant dense<0.000000e+00> : vector<48x1xf32>
    %8 = tpu.matmul %5, %7, %cst {dimension_numbers = #tpu.dot_dimension_numbers<[1], [0], [0], [1], [0, 0, 1, 1], [], []>} : vector<48x128xbf16>, vector<128x1xbf16>, vector<48x1xf32> -> vector<48x1xf32>
    %c0_7 = arith.constant 0 : index
    %c0_8 = arith.constant 0 : index
    %c0_9 = arith.constant 0 : index
    %c0_10 = arith.constant 0 : index
    %9 = vector.load %arg5[%c0_7, %c0_8, %c0_9, %c0_10] : memref<1x3x16x1xf32, #tpu.memory_space<vmem>>, vector<1x3x16x1xf32>
    %10 = vector.shape_cast %9 : vector<1x3x16x1xf32> to vector<3x16x1xf32>
    %11 = vector.shape_cast %8 : vector<48x1xf32> to vector<3x16x1xf32>
    %12 = arith.addf %10, %11 : vector<3x16x1xf32>
    %c0_11 = arith.constant 0 : index
    %c0_12 = arith.constant 0 : index
    %c0_13 = arith.constant 0 : index
    %c0_14 = arith.constant 0 : index
    %13 = vector.load %arg5[%c0_11, %c0_12, %c0_13, %c0_14] : memref<1x3x16x1xf32, #tpu.memory_space<vmem>>, vector<1x3x16x1xf32>
    %14 = vector.shape_cast %13 : vector<1x3x16x1xf32> to vector<3x16x1xf32>
    %15 = vector.shape_cast %12 : vector<3x16x1xf32> to vector<1x3x16x1xf32>
    tpu.vector_store %arg5[%c0_11, %c0_12, %c0_13, %c0_14], %15 {strides = array<i32>} : memref<1x3x16x1xf32, #tpu.memory_space<vmem>>, vector<1x3x16x1xf32>,
    return
  }
  func.func @transform_0(%arg0: i32, %arg1: i32, %arg2: i32) -> (i32, i32, i32, i32) {
    %c0_i32 = arith.constant 0 : i32
    %c0_i32_0 = arith.constant 0 : i32
    return %arg0, %c0_i32, %arg1, %arg2 : i32, i32, i32, i32
  }
  func.func @transform_1(%arg0: i32, %arg1: i32, %arg2: i32) -> (i32, i32, i32) {
    %c0_i32 = arith.constant 0 : i32
    %c0_i32_0 = arith.constant 0 : i32
    return %arg0, %arg2, %c0_i32 : i32, i32, i32
  }
  func.func @transform_2(%arg0: i32, %arg1: i32, %arg2: i32) -> (i32, i32, i32, i32) {
    %c0_i32 = arith.constant 0 : i32
    %c0_i32_0 = arith.constant 0 : i32
    %c0_i32_1 = arith.constant 0 : i32
    return %arg0, %c0_i32, %arg1, %c0_i32_0 : i32, i32, i32, i32
  }
}

</mosaic_0001>

<llo_original>
// kernel: tpu_custom_call.1
$region0: #{tpu_custom_call.1}
  #allocation0 [shape = 'u32[]', space=smem, size = 0x4, offset = 0x4, fixed_abs, tag = 'smem constant byte address 0x4 - core index']
  #allocation1 [shape = 'u32[144,128]{1,0:T(1,128)}', space=vmem, size = 0x12000, scoped, tag = 'internal scratch']
  %s0 = inlined_call_operand.vmem [shape: bf16[2,3,16,128], index: 0, kind: input, shape index: {}]
  %s1 = inlined_call_operand.vmem [shape: bf16[2,128,1], index: 1, kind: input, shape index: {}]
  %s2 = inlined_call_operand.vmem [shape: f32[2,3,16,1], index: 2, kind: output, shape index: {}]
  %s3 = sld [smem:[#allocation0]]
  $region45: #{tpu_custom_call.1} parent=0
    _
  %s5 = ssub.s32 1, %s3
  %s6 = scalar_select 0, %s5, %s3
  loop: start=0, step=1, limit=4
  $region2: #{tpu_custom_call.1} parent=0 // loop_pre_header
    _
  $region3: #{tpu_custom_call.1} parent=0 // loop_header
    %s8 = sphi 0, %s12
    %p9 = scmp.ge.s32.totalorder %s8, 4
    %s15 = sphi 0, %s34
    %s16 = sphi 0, %s30
    %s17 = sphi 0, %s26
    %s18 = sphi 0, %s15
    %s19 = sphi 0, %s16
    %s20 = sphi 0, %s17
    %s21 = sphi 0, %s18
    %s22 = sphi 0, %s19
    %s23 = sphi 0, %s20
    %s41 = sphi 0, %s43
    %s44 = sphi 0, %s41
    %s45 = sphi 0, %s44
    %s61 = sphi 0, %s45
    %s69 = sphi 0, %s71
    %s72 = sphi 0, %s69
    %s73 = sphi 0, %s72
    %s89 = sphi 0, %s73
    %s97 = sphi 0, %s99
    %s100 = sphi 0, %s97
    %s101 = sphi 0, %s100
    %s117 = sphi 0, %s101
  $region4: #{tpu_custom_call.1} parent=0 // loop_header_branch
    %11 = sbr.rel (%p9) target = $region8
  $region5: #{tpu_custom_call.1} parent=0 // loop_body
    %s13 = ssub.s32 %s8, 1
    %s14 = ssub.s32 %s8, 2
    %s24 = sadd.s32 1, %s17
    %p25 = scmp.ge.s32.totalorder %s24, 1
    %s26 = scalar_select %p25, 0, %s24
    %s27 = sadd.s32 1, %s16
    %s28 = scalar_select %p25, %s27, %s16
    %p29 = scmp.ge.s32.totalorder %s28, 1
    %s30 = scalar_select %p29, 0, %s28
    %s31 = sadd.s32 1, %s15
    %s32 = scalar_select %p29, %s31, %s15
    %p33 = scmp.ge.s32.totalorder %s32, 2
    %s34 = scalar_select %p33, 0, %s32
    %s35 = ssub.s32 %s15, %s34
    %s36 = ssub.s32 %s16, %s30
    %s37 = sor.u32 %s35, %s36
    %s38 = ssub.s32 %s17, %s26
    %s39 = sor.u32 %s37, %s38
    %p40 = scmp.eq.s32.totalorder %s39, 0
    %s42 = sadd.s32 %s41, 1
    %s43 = scalar_select %p40, %s41, %s42
    %p46 = pneg %p40
    %p47 = scmp.eq.s32.totalorder %s8, 1
    %p48 = por %p46, %p47
    %p49 = scmp.ne.s32.totalorder %s41, %s44
    %p50 = scmp.eq.s32.totalorder %s8, 0
    %p51 = por %p49, %p50
    %p52 = scmp.ne.s32.totalorder %s41, %s44
    %p53 = scmp.eq.s32.totalorder %s13, 1
    %p54 = por %p52, %p53
    %p55 = scmp.ne.s32.totalorder %s44, %s45
    %p56 = scmp.eq.s32.totalorder %s13, 0
    %p57 = por %p55, %p56
    %p58 = scmp.ne.s32.totalorder %s44, %s45
    %p59 = scmp.eq.s32.totalorder %s14, 1
    %p60 = por %p58, %p59
    %p62 = scmp.ne.s32.totalorder %s45, %s61
    %p63 = scmp.eq.s32.totalorder %s14, 0
    %p64 = por %p62, %p63
    %s65 = ssub.s32 %s15, %s34
    %s66 = ssub.s32 %s17, %s26
    %s67 = sor.u32 %s65, %s66
    %p68 = scmp.eq.s32.totalorder %s67, 0
    %s70 = sadd.s32 %s69, 1
    %s71 = scalar_select %p68, %s69, %s70
    %p74 = pneg %p68
    %p75 = scmp.eq.s32.totalorder %s8, 1
    %p76 = por %p74, %p75
    %p77 = scmp.ne.s32.totalorder %s69, %s72
    %p78 = scmp.eq.s32.totalorder %s8, 0
    %p79 = por %p77, %p78
    %p80 = scmp.ne.s32.totalorder %s69, %s72
    %p81 = scmp.eq.s32.totalorder %s13, 1
    %p82 = por %p80, %p81
    %p83 = scmp.ne.s32.totalorder %s72, %s73
    %p84 = scmp.eq.s32.totalorder %s13, 0
    %p85 = por %p83, %p84
    %p86 = scmp.ne.s32.totalorder %s72, %s73
    %p87 = scmp.eq.s32.totalorder %s14, 1
    %p88 = por %p86, %p87
    %p90 = scmp.ne.s32.totalorder %s73, %s89
    %p91 = scmp.eq.s32.totalorder %s14, 0
    %p92 = por %p90, %p91
    %s93 = ssub.s32 %s15, %s34
    %s94 = ssub.s32 %s16, %s30
    %s95 = sor.u32 %s93, %s94
    %p96 = scmp.eq.s32.totalorder %s95, 0
    %s98 = sadd.s32 %s97, 1
    %s99 = scalar_select %p96, %s97, %s98
    %p102 = pneg %p96
    %p103 = scmp.eq.s32.totalorder %s8, 1
    %p104 = por %p102, %p103
    %p105 = scmp.ne.s32.totalorder %s97, %s100
    %p106 = scmp.eq.s32.totalorder %s8, 0
    %p107 = por %p105, %p106
    %p108 = scmp.ne.s32.totalorder %s97, %s100
    %p109 = scmp.eq.s32.totalorder %s13, 1
    %p110 = por %p108, %p109
    %p111 = scmp.ne.s32.totalorder %s100, %s101
    %p112 = scmp.eq.s32.totalorder %s13, 0
    %p113 = por %p111, %p112
    %p114 = scmp.ne.s32.totalorder %s100, %s101
    %p115 = scmp.eq.s32.totalorder %s14, 1
    %p116 = por %p114, %p115
    %p118 = scmp.ne.s32.totalorder %s101, %s117
    %p119 = scmp.eq.s32.totalorder %s14, 0
    %p120 = por %p118, %p119
    %p121 = scmp.le.s32.totalorder 1, %s8
    %p122 = scmp.lt.s32.totalorder %s8, 3
    %p123 = pnand %p121, %p122
    %p124 = pneg %p123
    // Predicated region
    $region9: #{tpu_custom_call.1} parent=5 // pred_check
      _
    $region10: #{tpu_custom_call.1} parent=5 // pred_check_branch
      %126 = sbr.rel (%p123) target = $region12
    $region11: #{tpu_custom_call.1} parent=5 // pred_region
      %s127 = ssub.s32 %s8, 1
    $region12: #{tpu_custom_call.1} parent=5 // pred_fallthru
      _
    %p128 = scmp.lt.s32.totalorder %s8, 2
    // Predicated region
    $region13: #{tpu_custom_call.1} parent=5 // pred_check
      %p129 = pneg %p128
    $region14: #{tpu_custom_call.1} parent=5 // pred_check_branch
      %131 = sbr.rel (%p129) target = $region16
    $region15: #{tpu_custom_call.1} parent=5 // pred_region
      // Predicated region
      $region17: #{tpu_custom_call.1} parent=15 // pred_check
        %p132 = pneg %p51
      $region18: #{tpu_custom_call.1} parent=15 // pred_check_branch
        %134 = sbr.rel (%p132) target = $region20
      $region19: #{tpu_custom_call.1} parent=15 // pred_region
        %s135 = smul.u32 2, %s16
        %p136 = scmp.lt.s32.totalorder %s15, 1
        %s137 = scalar_select %p136, %s15, 1
        %p138 = scmp.lt.s32.totalorder %s135, 1
        %s139 = scalar_select %p138, %s135, 1
        %p140 = scmp.lt.s32.totalorder %s17, 0
        %s141 = scalar_select %p140, %s17, 0
        %s142 = sadd.s32 %s141, %s139
        %s143 = smul.addr %s137, 6
        %s144 = sadd.s32 %s142, %s143
        %s145 = smul.addr %s144, 4
        %s146 = scalar_lea.vmem %s0, %s145
        %s147 = smul.u32 2, %s16
      $region20: #{tpu_custom_call.1} parent=15 // pred_fallthru
        _
      // Predicated region
      $region21: #{tpu_custom_call.1} parent=15 // pred_check
        %p148 = pneg %p79
      $region22: #{tpu_custom_call.1} parent=15 // pred_check_branch
        %150 = sbr.rel (%p148) target = $region24
      $region23: #{tpu_custom_call.1} parent=15 // pred_region
        %s151 = smul.u32 16, %s17
        %p152 = scmp.lt.s32.totalorder %s15, 1
        %s153 = scalar_select %p152, %s15, 1
        %p154 = scmp.lt.s32.totalorder %s151, 15
        %s155 = scalar_select %p154, %s151, 15
        %s156 = smul.addr %s153, 16
        %s157 = sadd.s32 %s155, %s156
        %s158 = smul.addr %s157, 4
        %s159 = scalar_lea.vmem %s1, %s158
        %s160 = smul.u32 16, %s17
      $region24: #{tpu_custom_call.1} parent=15 // pred_fallthru
        _
    $region16: #{tpu_custom_call.1} parent=5 // pred_fallthru
      _
    %p161 = scmp.le.s32.totalorder 1, %s8
    %p162 = scmp.lt.s32.totalorder %s8, 3
    %p163 = pnand %p161, %p162
    %p164 = pneg %p163
    // Predicated region
    $region25: #{tpu_custom_call.1} parent=5 // pred_check
      _
    $region26: #{tpu_custom_call.1} parent=5 // pred_check_branch
      %166 = sbr.rel (%p163) target = $region28
    $region27: #{tpu_custom_call.1} parent=5 // pred_region
      %s167 = ssub.s32 %s8, 1
      %s168 = smul.u32 2, %s19
      %p169 = scmp.lt.s32.totalorder %s18, 1
      %s170 = scalar_select %p169, %s18, 1
      %p171 = scmp.lt.s32.totalorder %s168, 1
      %s172 = scalar_select %p171, %s168, 1
      %p173 = scmp.lt.s32.totalorder %s20, 0
      %s174 = scalar_select %p173, %s20, 0
      %s175 = sadd.s32 %s174, %s172
      %s176 = smul.addr %s170, 6
      %s177 = sadd.s32 %s175, %s176
      %s178 = smul.addr %s177, 4
      %s179 = scalar_lea.vmem %s0, %s178
      %p180 = pneg %p57
      %p181 = pneg %p54
      %s182 = smul.u32 16, %s20
      %p183 = scmp.lt.s32.totalorder %s18, 1
      %s184 = scalar_select %p183, %s18, 1
      %p185 = scmp.lt.s32.totalorder %s182, 15
      %s186 = scalar_select %p185, %s182, 15
      %s187 = smul.addr %s184, 16
      %s188 = sadd.s32 %s186, %s187
      %s189 = smul.addr %s188, 4
      %s190 = scalar_lea.vmem %s1, %s189
      %p191 = pneg %p85
      %p192 = pneg %p82
      %p193 = pneg %p113
      %p194 = pneg %p110
      %s195 = smul.u32 2, %s19
      %p196 = scmp.lt.s32.totalorder %s18, 1
      %s197 = scalar_select %p196, %s18, 1
      %p198 = scmp.lt.s32.totalorder %s195, 1
      %s199 = scalar_select %p198, %s195, 1
      %s200 = smul.addr %s197, 6
      %s201 = sadd.s32 %s199, %s200
      %s202 = smul.addr %s201, 8
      %s203 = scalar_lea.vmem %s2, %s202
      %s204 = smul.u32 2, %s19
      %p205 = scmp.lt.s32.totalorder %s18, 1
      %s206 = scalar_select %p205, %s18, 1
      %p207 = scmp.lt.s32.totalorder %s204, 1
      %s208 = scalar_select %p207, %s204, 1
      %p209 = scmp.lt.s32.totalorder %s20, 0
      %s210 = scalar_select %p209, %s20, 0
      %s211 = sadd.s32 %s210, %s208
      %s212 = smul.addr %s206, 6
      %s213 = sadd.s32 %s211, %s212
      %s214 = smul.addr %s213, 4
      %s215 = scalar_lea.vmem %s0, %s214
      %s216 = smul.u32 2, %s19
      %s217 = smul.u32 16, %s20
      %p218 = scmp.lt.s32.totalorder %s18, 1
      %s219 = scalar_select %p218, %s18, 1
      %p220 = scmp.lt.s32.totalorder %s217, 15
      %s221 = scalar_select %p220, %s217, 15
      %s222 = smul.addr %s219, 16
      %s223 = sadd.s32 %s221, %s222
      %s224 = smul.addr %s223, 4
      %s225 = scalar_lea.vmem %s1, %s224
      %s226 = smul.u32 16, %s20
      %s227 = smul.u32 2, %s19
      %p228 = scmp.lt.s32.totalorder %s18, 1
      %s229 = scalar_select %p228, %s18, 1
      %p230 = scmp.lt.s32.totalorder %s227, 1
      %s231 = scalar_select %p230, %s227, 1
      %s232 = smul.addr %s229, 6
      %s233 = sadd.s32 %s231, %s232
      %s234 = smul.addr %s233, 8
      %s235 = scalar_lea.vmem %s2, %s234
      %s236 = smul.u32 2, %s19
      %p238 = scmp.eq.s32.totalorder %s20, 0
      // Predicated region
      $region29: #{tpu_custom_call.1} parent=27 // pred_check
        %p239 = pneg %p238
      $region30: #{tpu_custom_call.1} parent=27 // pred_check_branch
        %241 = sbr.rel (%p239) target = $region32
      $region31: #{tpu_custom_call.1} parent=27 // pred_region
        %vm242 = vcmask 7168
        %243 = vst.msk [vmem:[%s235] sm:$0xff] %vm242, 0.0
        %244 = vst.msk [vmem:[%s235 + $0x8] sm:$0xff] %vm242, 0.0
        %245 = vst.msk [vmem:[%s235 + $0x10] sm:$0xff] %vm242, 0.0
        %246 = vst.msk [vmem:[%s235 + $0x18] sm:$0xff] %vm242, 0.0
        %247 = vst.msk [vmem:[%s235 + $0x20] sm:$0xff] %vm242, 0.0
        %248 = vst.msk [vmem:[%s235 + $0x28] sm:$0xff] %vm242, 0.0
      $region32: #{tpu_custom_call.1} parent=27 // pred_fallthru
        _
      %v249 = vld [vmem:[%s215] sm:$0xf]
      %v250 = vld [vmem:[%s215 + $0x4] sm:$0xf]
      %v251 = vld [vmem:[%s215 + $0x8] sm:$0xf]
      %v252 = vld [vmem:[%s215 + $0xc] sm:$0xf]
      %v253 = vld [vmem:[%s215 + $0x10] sm:$0xf]
      %v254 = vld [vmem:[%s215 + $0x14] sm:$0xf]
      %v255 = vld [vmem:[%s225] sm:$0xf]
      %v256 = vld [vmem:[%s225 + $0x4] sm:$0xf]
      %v257 = vld [vmem:[%s225 + $0x8] sm:$0xf]
      %v258 = vld [vmem:[%s225 + $0xc] sm:$0xf]
      %v259 = vld [vmem:[%s225 + $0x10] sm:$0xf]
      %v260 = vld [vmem:[%s225 + $0x14] sm:$0xf]
      %v261 = vld [vmem:[%s225 + $0x18] sm:$0xf]
      %v262 = vld [vmem:[%s225 + $0x1c] sm:$0xf]
      %v263 = vld [vmem:[%s225 + $0x20] sm:$0xf]
      %v264 = vld [vmem:[%s225 + $0x24] sm:$0xf]
      %v265 = vld [vmem:[%s225 + $0x28] sm:$0xf]
      %v266 = vld [vmem:[%s225 + $0x2c] sm:$0xf]
      %v267 = vld [vmem:[%s225 + $0x30] sm:$0xf]
      %v268 = vld [vmem:[%s225 + $0x34] sm:$0xf]
      %v269 = vld [vmem:[%s225 + $0x38] sm:$0xf]
      %v270 = vld [vmem:[%s225 + $0x3c] sm:$0xf]
      %v277 = vunpack.c.l.b16 %v249
      %v278 = vunpack.c.l.b16 %v250
      %v279 = vunpack.c.l.b16 %v251
      %v280 = vunpack.c.l.b16 %v252
      %v281 = vunpack.c.l.b16 %v253
      %v282 = vunpack.c.l.b16 %v254
      %v283 = vpack.c.b16 %v278, %v277
      %v284 = vpack.c.b16 %v280, %v279
      %v285 = vpack.c.b16 %v282, %v281
      %v305 = vunpack.c.l.b16 %v255
      %v306 = vunpack.c.l.b16 %v256
      %v307 = vunpack.c.l.b16 %v257
      %v308 = vunpack.c.l.b16 %v258
      %v309 = vunpack.c.l.b16 %v259
      %v310 = vunpack.c.l.b16 %v260
      %v311 = vunpack.c.l.b16 %v261
      %v312 = vunpack.c.l.b16 %v262
      %v313 = vunpack.c.l.b16 %v263
      %v314 = vunpack.c.l.b16 %v264
      %v315 = vunpack.c.l.b16 %v265
      %v316 = vunpack.c.l.b16 %v266
      %v317 = vunpack.c.l.b16 %v267
      %v318 = vunpack.c.l.b16 %v268
      %v319 = vunpack.c.l.b16 %v269
      %v320 = vunpack.c.l.b16 %v270
      %v321 = vpack.c.b16 %v306, %v305
      %v322 = vpack.c.b16 %v308, %v307
      %v323 = vpack.c.b16 %v310, %v309
      %v324 = vpack.c.b16 %v312, %v311
      %v325 = vpack.c.b16 %v314, %v313
      %v326 = vpack.c.b16 %v316, %v315
      %v327 = vpack.c.b16 %v318, %v317
      %v328 = vpack.c.b16 %v320, %v319
      %337 = vmatprep.subr.bf16.mxu0 0
      %338 = vmatpush1.bf16.msra.mxu0 %v321
      %339 = vmatprep.subr.bf16.mxu0 0
      %340 = vmatpush1.bf16.msra.mxu0 %v322
      %341 = vmatprep.subr.bf16.mxu0 0
      %342 = vmatpush1.bf16.msra.mxu0 %v323
      %343 = vmatprep.subr.bf16.mxu0 0
      %344 = vmatpush1.bf16.msra.mxu0 %v324
      %345 = vmatprep.subr.bf16.mxu0 0
      %346 = vmatpush1.bf16.msra.mxu0 %v325
      %347 = vmatprep.subr.bf16.mxu0 0
      %348 = vmatpush1.bf16.msra.mxu0 %v326
      %349 = vmatprep.subr.bf16.mxu0 0
      %350 = vmatpush1.bf16.msra.mxu0 %v327
      %351 = vmatprep.subr.bf16.mxu0 0
      %352 = vmatpush1.bf16.msra.mxu0 %v328
      %353 = vmatprep.subr.bf16.mxu0 0
      %354 = vmatpush1.bf16.msra.mxu0 0
      %355 = vmatprep.subr.bf16.mxu0 0
      %356 = vmatpush1.bf16.msra.mxu0 0
      %357 = vmatprep.subr.bf16.mxu0 0
      %358 = vmatpush1.bf16.msra.mxu0 0
      %359 = vmatprep.subr.bf16.mxu0 0
      %360 = vmatpush1.bf16.msra.mxu0 0
      %361 = vmatprep.subr.bf16.mxu0 0
      %362 = vmatpush1.bf16.msra.mxu0 0
      %363 = vmatprep.subr.bf16.mxu0 0
      %364 = vmatpush1.bf16.msra.mxu0 0
      %365 = vmatprep.subr.bf16.mxu0 0
      %366 = vmatpush1.bf16.msra.mxu0 0
      %367 = vmatprep.subr.bf16.mxu0 0
      %368 = vmatpush1.bf16.msra.mxu0 0
      %369 = vmatprep.mubr.bf16.mxu0 0
      %370 = vmatmul.mubr.bf16.gmra.mrb[0].mxu0 %v283
      %v371 = vpop.f32.mrb[0].mxu0
      %v372 = vadd.f32 0.0, %v371
      %v373 = vpop.f32.mrb[0].mxu0
      %v374 = vpop.f32.mrb[0].mxu0
      %v375 = vadd.f32 0.0, %v374
      %v376 = vpop.f32.mrb[0].mxu0
      %377 = vmatprep.mubr.bf16.mxu0 0
      %378 = vmatmul.mubr.bf16.gmra.mrb[0].mxu0 %v284
      %v379 = vpop.f32.mrb[0].mxu0
      %v380 = vadd.f32 0.0, %v379
      %v381 = vpop.f32.mrb[0].mxu0
      %v382 = vpop.f32.mrb[0].mxu0
      %v383 = vadd.f32 0.0, %v382
      %v384 = vpop.f32.mrb[0].mxu0
      %385 = vmatprep.mubr.bf16.mxu0 0
      %386 = vmatmul.mubr.bf16.gmra.mrb[0].mxu0 %v285
      %v387 = vpop.f32.mrb[0].mxu0
      %v388 = vadd.f32 0.0, %v387
      %v389 = vpop.f32.mrb[0].mxu0
      %v390 = vpop.f32.mrb[0].mxu0
      %v391 = vadd.f32 0.0, %v390
      %v392 = vpop.f32.mrb[0].mxu0
      %393 = vdwg.mxu0
      %v394 = vld [vmem:[%s235] sm:$0xff]
      %v395 = vld [vmem:[%s235 + $0x8] sm:$0xff]
      %v396 = vld [vmem:[%s235 + $0x10] sm:$0xff]
      %v397 = vld [vmem:[%s235 + $0x18] sm:$0xff]
      %v398 = vld [vmem:[%s235 + $0x20] sm:$0xff]
      %v399 = vld [vmem:[%s235 + $0x28] sm:$0xff]
      %v400 = vadd.f32 %v394, %v372
      %v401 = vadd.f32 %v395, %v375
      %v402 = vadd.f32 %v396, %v380
      %v403 = vadd.f32 %v397, %v383
      %v404 = vadd.f32 %v398, %v388
      %v405 = vadd.f32 %v399, %v391
      %vm406 = vcmask 7168
      %407 = vst.msk [vmem:[%s235] sm:$0xff] %vm406, %v400
      %408 = vst.msk [vmem:[%s235 + $0x8] sm:$0xff] %vm406, %v401
      %409 = vst.msk [vmem:[%s235 + $0x10] sm:$0xff] %vm406, %v402
      %410 = vst.msk [vmem:[%s235 + $0x18] sm:$0xff] %vm406, %v403
      %411 = vst.msk [vmem:[%s235 + $0x20] sm:$0xff] %vm406, %v404
      %412 = vst.msk [vmem:[%s235 + $0x28] sm:$0xff] %vm406, %v405
      %s413 = smul.u32 2, %s19
      %p414 = scmp.lt.s32.totalorder %s18, 1
      %s415 = scalar_select %p414, %s18, 1
      %p416 = scmp.lt.s32.totalorder %s413, 1
      %s417 = scalar_select %p416, %s413, 1
      %s418 = smul.addr %s415, 6
      %s419 = sadd.s32 %s417, %s418
      %s420 = smul.addr %s419, 8
      %s421 = scalar_lea.vmem %s2, %s420
      // Predicated region
      $region33: #{tpu_custom_call.1} parent=27 // pred_check
        %p422 = pneg %p110
      $region34: #{tpu_custom_call.1} parent=27 // pred_check_branch
        %424 = sbr.rel (%p422) target = $region36
      $region35: #{tpu_custom_call.1} parent=27 // pred_region
        %s425 = smul.u32 2, %s19
      $region36: #{tpu_custom_call.1} parent=27 // pred_fallthru
        _
    $region28: #{tpu_custom_call.1} parent=5 // pred_fallthru
      _
    %p426 = scmp.le.s32.totalorder 2, %s8
    // Predicated region
    $region37: #{tpu_custom_call.1} parent=5 // pred_check
      %p427 = pneg %p426
    $region38: #{tpu_custom_call.1} parent=5 // pred_check_branch
      %429 = sbr.rel (%p427) target = $region40
    $region39: #{tpu_custom_call.1} parent=5 // pred_region
      %s430 = ssub.s32 %s8, 2
      // Predicated region
      $region41: #{tpu_custom_call.1} parent=39 // pred_check
        %p431 = pneg %p116
      $region42: #{tpu_custom_call.1} parent=39 // pred_check_branch
        %433 = sbr.rel (%p431) target = $region44
      $region43: #{tpu_custom_call.1} parent=39 // pred_region
        %s434 = smul.u32 2, %s22
        %p435 = scmp.lt.s32.totalorder %s21, 1
        %s436 = scalar_select %p435, %s21, 1
        %p437 = scmp.lt.s32.totalorder %s434, 1
        %s438 = scalar_select %p437, %s434, 1
        %s439 = smul.addr %s436, 6
        %s440 = sadd.s32 %s438, %s439
        %s441 = smul.addr %s440, 8
        %s442 = scalar_lea.vmem %s2, %s441
      $region44: #{tpu_custom_call.1} parent=39 // pred_fallthru
        _
    $region40: #{tpu_custom_call.1} parent=5 // pred_fallthru
      _
  $region6: #{tpu_custom_call.1} parent=0 // loop_footer
    %s12 = sadd.s32 1, %s8
  $region7: #{tpu_custom_call.1} parent=0 // loop_footer_branch
    %7 = sbr.rel target = $region3
  $region8: #{tpu_custom_call.1} parent=0 // loop_exit
    _

</llo_original>
